<compile_context>
chip_gen: v5e
topology: v5e:2x2
jax: 0.10.0
libtpu: 0.0.40
codegen_flags: <defaults>
</compile_context>

<pallas_src>
import functools

import jax
import jax.numpy as jnp
from jax.experimental import pallas as pl
from jax.experimental.pallas import tpu as pltpu


# ----------------------------------------------------------------------------
# Kernels
# ----------------------------------------------------------------------------
def gnn_layer_kernel(a_ref, sc_ref, xn_ref, xr_ref, ws_ref, wa_ref, b_ref,
                     out_ref, acc_ref):
    """One SimpleConv(mean, combine_root='cat') + Linear + ReLU layer.

    Grid: (node-row tiles ["parallel"], neighbor-column tiles ["arbitrary"]).
    a_ref is an int8 tile of the row-normalized adjacency (mean aggregation
    baked in, per-row dequant scale in sc_ref); acc_ref accumulates
    A_norm[row_tile] @ x in f32; cat([x, agg]) @ W is folded into two [H, H]
    matmuls fused with bias + ReLU at the last contraction step.
    """
    k = pl.program_id(1)

    @pl.when(k == 0)
    def _():
        acc_ref[...] = jnp.zeros_like(acc_ref)

    # int8 A tile (per-row scale factored out) -> exact bf16 -> MXU, f32 acc.
    acc_ref[...] += jnp.dot(a_ref[...].astype(jnp.bfloat16), xn_ref[...],
                            preferred_element_type=jnp.float32)

    @pl.when(k == pl.num_programs(1) - 1)
    def _():
        # Re-apply the per-row dequantization scale, then the cat-root linear.
        agg = (acc_ref[...] * sc_ref[...]).astype(jnp.bfloat16)
        h = (jnp.dot(xr_ref[...], ws_ref[...],
                     preferred_element_type=jnp.float32)
             + jnp.dot(agg, wa_ref[...],
                       preferred_element_type=jnp.float32)
             + b_ref[...])
        out_ref[...] = jnp.maximum(h, 0.0).astype(out_ref.dtype)


def head_kernel(x_ref, h2_ref, w3_ref, b3_ref, w4_ref, b4_ref, noise_ref,
                enc_ref, z_ref, zl_ref, kl_ref, *, K, H):
    """Row tile of: residual, mu/log_var heads, lane-dense reparameterization,
    Z.mean(1), and per-row KL partial sums (reduced in the wrapper)."""
    x = x_ref[...]                                   # [th, H] f32 (orig enc)
    enc = h2_ref[...] + x                            # residual
    enc_ref[...] = enc

    enc_b = enc.astype(jnp.bfloat16)
    mu = (jnp.dot(enc_b, w3_ref[...], preferred_element_type=jnp.float32)
          + b3_ref[...])
    log_var = (jnp.dot(enc_b, w4_ref[...], preferred_element_type=jnp.float32)
               + b4_ref[...])
    std = jnp.exp(0.5 * log_var)                     # reused: std*std = e^lv

    # Reparameterization as a static K-loop into the lane-dense [th, K*H]
    # output (no jnp.tile temporaries); Z.mean(1) falls out of the same loop.
    noise = noise_ref[...]
    z_sum = jnp.zeros_like(mu)
    for k in range(K):
        zk = mu + noise[:, k * H:(k + 1) * H] * std
        z_ref[:, k * H:(k + 1) * H] = zk
        z_sum = z_sum + zk
    zl_ref[...] = (z_sum * (1.0 / K)).astype(zl_ref.dtype)

    # KL is identical across K, so mean over N*K rows == mean over N rows.
    # Emit per-row partials; the (-0.5 / N) factor is applied in the wrapper.
    kl_ref[...] = jnp.sum(1.0 + log_var - mu * mu - std * std,
                          axis=1, keepdims=True)


def bce_kernel(zli_ref, zlj_ref, adj_ref, out_ref, acc_ref):
    """Tile (i, j) of BCEWithLogits(Z_l @ Z_l.T, ADJ).

    Accumulates element-wise into a (tb, tb) f32 VMEM accumulator (pure VPU
    adds per step, no scalar SMEM RMW) and writes per-row partial sums at the
    last j so the i axis can run 'parallel' on v7x; the full [N, N] logits
    matrix never materializes.
    """
    j = pl.program_id(1)

    @pl.when(j == 0)
    def _():
        acc_ref[...] = jnp.zeros_like(acc_ref)

    logits = jax.lax.dot_general(
        zli_ref[...], zlj_ref[...], (((1,), (1,)), ((), ())),
        preferred_element_type=jnp.float32)          # [tb, tb]
    adj = adj_ref[...].astype(jnp.float32)           # bf16 0/1 -> f32
    acc_ref[...] += (jnp.maximum(logits, 0.0) - logits * adj
                     + jnp.log1p(jnp.exp(-jnp.abs(logits))))

    @pl.when(j == pl.num_programs(1) - 1)
    def _():
        out_ref[...] = jnp.sum(acc_ref[...], axis=1, keepdims=True)


# ----------------------------------------------------------------------------
# Wrappers
# ----------------------------------------------------------------------------
def _pick_tile(n, cap):
    """Full dim if n <= cap, else the largest 128-multiple divisor <= cap."""
    if n <= cap:
        return n
    t = (cap // 128) * 128
    while t >= 128:
        if n % t == 0:
            return t
        t -= 128
    return n


def _row_tile(n, cap):
    """Row tile; keep >= 2 tiles when possible so 'parallel' grid axes can be
    split across v7x's two TensorCores (no effect on v5e/v6e)."""
    if n >= 256:
        cap = min(cap, max(128, ((n // 2) // 128) * 128))
    return _pick_tile(n, cap)


def _gnn_layer(x_bf16, a_q, a_scale, w_self, w_agg, b, *, tm, tn, out_dtype):
    N, H = x_bf16.shape
    return pl.pallas_call(
        gnn_layer_kernel,
        out_shape=jax.ShapeDtypeStruct((N, H), out_dtype),
        grid_spec=pltpu.PrefetchScalarGridSpec(
            num_scalar_prefetch=0,
            grid=(N // tm, N // tn),
            in_specs=[
                pl.BlockSpec((tm, tn), lambda i, k: (i, k)),   # A_q (int8)
                pl.BlockSpec((tm, 1), lambda i, k: (i, 0)),    # row dequant sc
                pl.BlockSpec((tn, H), lambda i, k: (k, 0)),    # neighbor feats
                pl.BlockSpec((tm, H), lambda i, k: (i, 0)),    # root feats
                pl.BlockSpec((H, H), lambda i, k: (0, 0)),     # W_self
                pl.BlockSpec((H, H), lambda i, k: (0, 0)),     # W_agg
                pl.BlockSpec((1, H), lambda i, k: (0, 0)),     # bias
            ],
            out_specs=pl.BlockSpec((tm, H), lambda i, k: (i, 0)),
            scratch_shapes=[pltpu.VMEM((tm, H), jnp.float32)],
        ),
        compiler_params=pltpu.CompilerParams(
            dimension_semantics=("parallel", "arbitrary"),
            vmem_limit_bytes=48 * 1024 * 1024),
    )(a_q, a_scale, x_bf16, x_bf16, w_self, w_agg, b)


def init_params(key, H):
    """Deterministic nn.Linear-style init. Weights stored as [in, out];
    pro1/pro2 are pre-split into (self, agg) halves of the cat-input weight."""
    ks = jax.random.split(key, 8)

    def linear(kw, kb, fan_in, fan_out):
        bound = 1.0 / jnp.sqrt(jnp.float32(fan_in))
        w = jax.random.uniform(kw, (fan_in, fan_out), jnp.float32, -bound, bound)
        b = jax.random.uniform(kb, (1, fan_out), jnp.float32, -bound, bound)
        return w, b

    w1, b1 = linear(ks[0], ks[1], 2 * H, H)   # GNN.pro1 (on cat([x, agg]))
    w2, b2 = linear(ks[2], ks[3], 2 * H, H)   # GNN.pro2
    w3, b3 = linear(ks[4], ks[5], H, H)       # VGAE.pro3
    w4, b4 = linear(ks[6], ks[7], H, H)       # VGAE.pro4
    return dict(
        w1_self=w1[:H, :], w1_agg=w1[H:, :], b1=b1,
        w2_self=w2[:H, :], w2_agg=w2[H:, :], b2=b2,
        w3=w3, b3=b3, w4=w4, b4=b4)


def vgae_forward(enc, edge_index, edge_attr, ADJ, noise, params):
    N, H = enc.shape
    K = noise.shape[1]

    # --- glue: densify, row-normalize (mean aggregation) and int8-quantize --
    # (PyG message flow: edge_index[0]=src -> edge_index[1]=dst.)
    src, dst = edge_index[0], edge_index[1]
    A = jnp.zeros((N, N), jnp.float32).at[dst, src].add(
        edge_attr.astype(jnp.float32))
    cnt = jnp.zeros((N,), jnp.float32).at[dst].add(1.0)
    dinv = jnp.where(cnt > 0, 1.0 / cnt, 0.0).reshape(N, 1)
    A_norm = A * dinv
    # Symmetric per-row int8 quantization: the GNN layers are HBM streams of
    # A, so halving/quartering its bytes is the dominant win.  Dequantized to
    # bf16 in-kernel (exact), so it works on v5e/v6e/v7x alike.
    row_max = jnp.max(jnp.abs(A_norm), axis=1, keepdims=True)
    a_scale = jnp.where(row_max > 0, row_max / 127.0, 1.0)   # [N, 1] f32
    A_q = jnp.round(A_norm / a_scale).astype(jnp.int8)       # [N, N] int8
    # TODO(synk): for production graph sizes replace the dense [N, N]
    # adjacency with a CSR/gather formulation (scalar-prefetch row offsets +
    # pl.ANY manual DMA) so HBM traffic scales with E instead of N^2.
    # TODO(synk): pad N to a multiple of 128 (masking padded rows in A_norm,
    # KL and BCE) when graphs are not 128-aligned, so tiles stay pipelined.

    tm = _row_tile(N, 512)     # GNN node-row tile (>= 2 tiles on v7x)
    tn = _pick_tile(N, 2048)   # GNN contraction tile (amortize per-step cost)
    th = _row_tile(N, 512)     # head row tile
    tb = _row_tile(N, 256)     # BCE row/col tile

    to_bf16 = lambda a: a.astype(jnp.bfloat16)

    # --- GNN layer 1 and 2 (layer 1 emits bf16 directly for layer 2) --------
    h1 = _gnn_layer(to_bf16(enc), A_q, a_scale, to_bf16(params["w1_self"]),
                    to_bf16(params["w1_agg"]), params["b1"], tm=tm, tn=tn,
                    out_dtype=jnp.bfloat16)
    h2 = _gnn_layer(h1, A_q, a_scale, to_bf16(params["w2_self"]),
                    to_bf16(params["w2_agg"]), params["b2"], tm=tm, tn=tn,
                    out_dtype=jnp.float32)

    # --- residual + heads + reparameterization + KL (row-tiled) -------------
    noise_flat = noise.reshape(N, K * H)
    enc_out, Z_flat, z_l, kl_rows = pl.pallas_call(
        functools.partial(head_kernel, K=K, H=H),
        out_shape=(
            jax.ShapeDtypeStruct((N, H), jnp.float32),        # enc (residual)
            jax.ShapeDtypeStruct((N, K * H), jnp.float32),    # Z, lane-dense
            jax.ShapeDtypeStruct((N, H), jnp.bfloat16),       # Z_l = Z.mean(1)
            jax.ShapeDtypeStruct((N, 1), jnp.float32),        # KL row partials
        ),
        grid_spec=pltpu.PrefetchScalarGridSpec(
            num_scalar_prefetch=0,
            grid=(N // th,),
            in_specs=[
                pl.BlockSpec((th, H), lambda i: (i, 0)),       # enc (original)
                pl.BlockSpec((th, H), lambda i: (i, 0)),       # h2
                pl.BlockSpec((H, H), lambda i: (0, 0)),        # W3
                pl.BlockSpec((1, H), lambda i: (0, 0)),        # b3
                pl.BlockSpec((H, H), lambda i: (0, 0)),        # W4
                pl.BlockSpec((1, H), lambda i: (0, 0)),        # b4
                pl.BlockSpec((th, K * H), lambda i: (i, 0)),   # noise
            ],
            out_specs=(
                pl.BlockSpec((th, H), lambda i: (i, 0)),
                pl.BlockSpec((th, K * H), lambda i: (i, 0)),
                pl.BlockSpec((th, H), lambda i: (i, 0)),
                pl.BlockSpec((th, 1), lambda i: (i, 0)),
            ),
        ),
        compiler_params=pltpu.CompilerParams(
            dimension_semantics=("parallel",)),
    )(enc, h2, to_bf16(params["w3"]), params["b3"],
      to_bf16(params["w4"]), params["b4"], noise_flat)

    kl_loss = (-0.5 / N) * jnp.sum(kl_rows)

    # --- graph reconstruction loss: BCEWithLogits(Z_l @ Z_l.T, ADJ) ----------
    # ADJ streamed as bf16 (exact for 0/1 values); per-row partial sums keep
    # the i axis 'parallel' (v7x megacore) and the j axis 'arbitrary'.
    bce_rows = pl.pallas_call(
        bce_kernel,
        out_shape=jax.ShapeDtypeStruct((N, 1), jnp.float32),
        grid_spec=pltpu.PrefetchScalarGridSpec(
            num_scalar_prefetch=0,
            grid=(N // tb, N // tb),
            in_specs=[
                pl.BlockSpec((tb, H), lambda i, j: (i, 0)),    # Z_l rows
                pl.BlockSpec((tb, H), lambda i, j: (j, 0)),    # Z_l cols
                pl.BlockSpec((tb, tb), lambda i, j: (i, j)),   # ADJ tile
            ],
            out_specs=pl.BlockSpec((tb, 1), lambda i, j: (i, 0)),
            scratch_shapes=[pltpu.VMEM((tb, tb), jnp.float32)],
        ),
        compiler_params=pltpu.CompilerParams(
            dimension_semantics=("parallel", "arbitrary"),
            vmem_limit_bytes=48 * 1024 * 1024),
    )(z_l, z_l, ADJ.astype(jnp.bfloat16))

    g_loss = jnp.sum(bce_rows) / (N * N)
    vae_loss = kl_loss + g_loss
    return enc_out, Z_flat.reshape(N, K, H), vae_loss


# ----------------------------------------------------------------------------
# Example run
# ----------------------------------------------------------------------------
if __name__ == "__main__":
    key = jax.random.PRNGKey(0)
    N, H, K, E = 8, 32, 4, 24   # nodes, feats_hidden, latent samples, edges

    k_enc, k_src, k_dst, k_attr, k_adj, k_noise, k_params = jax.random.split(key, 7)

    enc = jax.random.normal(k_enc, (N, H), jnp.float32)
    src = jax.random.randint(k_src, (E,), 0, N)
    dst = jax.random.randint(k_dst, (E,), 0, N)
    edge_index = jnp.stack([src, dst])                            # [2, E]
    edge_attr = jax.random.uniform(k_attr, (E,), jnp.float32)     # [E]
    ADJ = (jax.random.uniform(k_adj, (N, N)) > 0.5).astype(jnp.float32)
    # TODO(synk): torch.randn_like inside forward is replaced by externally
    # supplied deterministic Gaussian noise (same distribution, passed as input).
    noise = jax.random.normal(k_noise, (N, K, H), jnp.float32)

    params = init_params(k_params, H)

    enc_out, Z, vae_loss = vgae_forward(enc, edge_index, edge_attr, ADJ, noise,
                                        params)
    jax.block_until_ready((enc_out, Z, vae_loss))

    assert enc_out.shape == (N, H)
    assert Z.shape == (N, K, H)
    assert vae_loss.shape == ()
    assert bool(jnp.isfinite(vae_loss))
    print("KERNEL_OK")
</pallas_src>

<mosaic_0001>
module attributes {stable_mosaic.version = 11 : i64} {
  func.func @gnn_layer_kernel(%arg0: i32, %arg1: i32, %arg2: memref<8x8xi8, #tpu.memory_space<vmem>>, %arg3: memref<8x1xf32, #tpu.memory_space<vmem>>, %arg4: memref<8x32xbf16, #tpu.memory_space<vmem>>, %arg5: memref<8x32xbf16, #tpu.memory_space<vmem>>, %arg6: memref<32x32xbf16, #tpu.memory_space<vmem>>, %arg7: memref<32x32xbf16, #tpu.memory_space<vmem>>, %arg8: memref<1x32xf32, #tpu.memory_space<vmem>>, %arg9: memref<8x32xbf16, #tpu.memory_space<vmem>>, %arg10: memref<8x32xf32, #tpu.memory_space<vmem>>) attributes {dimension_semantics = [#tpu.dimension_semantics<parallel>, #tpu.dimension_semantics<arbitrary>], iteration_bounds = array<i64: 1, 1>, scalar_prefetch = 0 : i64, scratch_operands = 1 : i64, tpu.core_type = #tpu.core_type<tc>, window_params = [{transform_indices = @transform_0, window_bounds = array<i64: 8, 8>}, {transform_indices = @transform_1, window_bounds = array<i64: 8, 1>}, {transform_indices = @transform_2, window_bounds = array<i64: 8, 32>}, {transform_indices = @transform_3, window_bounds = array<i64: 8, 32>}, {pipeline_mode = #tpu.pipeline_mode<synchronous>, transform_indices = @transform_4, window_bounds = array<i64: 32, 32>}, {pipeline_mode = #tpu.pipeline_mode<synchronous>, transform_indices = @transform_5, window_bounds = array<i64: 32, 32>}, {pipeline_mode = #tpu.pipeline_mode<synchronous>, transform_indices = @transform_6, window_bounds = array<i64: 1, 32>}, {transform_indices = @transform_7, window_bounds = array<i64: 8, 32>}]} {
    %c0_i32 = arith.constant 0 : i32
    %0 = arith.cmpi eq, %arg1, %c0_i32 : i32
    %1 = arith.extui %0 : i1 to i32
    %c0_i32_0 = arith.constant 0 : i32
    %2 = arith.cmpi ne, %1, %c0_i32_0 : i32
    scf.if %2 {
      %cst_10 = arith.constant 0.000000e+00 : f32
      %13 = vector.broadcast %cst_10 : f32 to vector<8x32xf32>
      %c0_11 = arith.constant 0 : index
      %c0_12 = arith.constant 0 : index
      %14 = vector.load %arg10[%c0_11, %c0_12] : memref<8x32xf32, #tpu.memory_space<vmem>>, vector<8x32xf32>
      tpu.vector_store %arg10[%c0_11, %c0_12], %13 {strides = array<i32>} : memref<8x32xf32, #tpu.memory_space<vmem>>, vector<8x32xf32>,
    } else {
    }
    %c0 = arith.constant 0 : index
    %c0_1 = arith.constant 0 : index
    %3 = vector.load %arg10[%c0, %c0_1] : memref<8x32xf32, #tpu.memory_space<vmem>>, vector<8x32xf32>
    %c0_2 = arith.constant 0 : index
    %c0_3 = arith.constant 0 : index
    %4 = vector.load %arg2[%c0_2, %c0_3] : memref<8x8xi8, #tpu.memory_space<vmem>>, vector<8x8xi8>
    %5 = arith.sitofp %4 : vector<8x8xi8> to vector<8x8xbf16>
    %c0_4 = arith.constant 0 : index
    %c0_5 = arith.constant 0 : index
    %6 = vector.load %arg4[%c0_4, %c0_5] : memref<8x32xbf16, #tpu.memory_space<vmem>>, vector<8x32xbf16>
    %cst = arith.constant dense<0.000000e+00> : vector<8x32xf32>
    %7 = tpu.matmul %5, %6, %cst {dimension_numbers = #tpu.dot_dimension_numbers<[1], [0], [0], [1], [0, 0, 1, 1], [], []>} : vector<8x8xbf16>, vector<8x32xbf16>, vector<8x32xf32> -> vector<8x32xf32>
    %8 = arith.addf %3, %7 : vector<8x32xf32>
    %c0_6 = arith.constant 0 : index
    %c0_7 = arith.constant 0 : index
    %9 = vector.load %arg10[%c0_6, %c0_7] : memref<8x32xf32, #tpu.memory_space<vmem>>, vector<8x32xf32>
    tpu.vector_store %arg10[%c0_6, %c0_7], %8 {strides = array<i32>} : memref<8x32xf32, #tpu.memory_space<vmem>>, vector<8x32xf32>,
    %c0_i32_8 = arith.constant 0 : i32
    %10 = arith.cmpi eq, %arg1, %c0_i32_8 : i32
    %11 = arith.extui %10 : i1 to i32
    %c0_i32_9 = arith.constant 0 : i32
    %12 = arith.cmpi ne, %11, %c0_i32_9 : i32
    scf.if %12 {
      %c0_10 = arith.constant 0 : index
      %c0_11 = arith.constant 0 : index
      %13 = vector.load %arg10[%c0_10, %c0_11] : memref<8x32xf32, #tpu.memory_space<vmem>>, vector<8x32xf32>
      %c0_12 = arith.constant 0 : index
      %c0_13 = arith.constant 0 : index
      %14 = vector.load %arg3[%c0_12, %c0_13] : memref<8x1xf32, #tpu.memory_space<vmem>>, vector<8x1xf32>
      %15 = vector.broadcast %14 : vector<8x1xf32> to vector<8x32xf32>
      %16 = arith.mulf %13, %15 : vector<8x32xf32>
      %17 = arith.truncf %16 : vector<8x32xf32> to vector<8x32xbf16>
      %c0_14 = arith.constant 0 : index
      %c0_15 = arith.constant 0 : index
      %18 = vector.load %arg5[%c0_14, %c0_15] : memref<8x32xbf16, #tpu.memory_space<vmem>>, vector<8x32xbf16>
      %c0_16 = arith.constant 0 : index
      %c0_17 = arith.constant 0 : index
      %19 = vector.load %arg6[%c0_16, %c0_17] : memref<32x32xbf16, #tpu.memory_space<vmem>>, vector<32x32xbf16>
      %cst_18 = arith.constant dense<0.000000e+00> : vector<8x32xf32>
      %20 = tpu.matmul %18, %19, %cst_18 {dimension_numbers = #tpu.dot_dimension_numbers<[1], [0], [0], [1], [0, 0, 1, 1], [], []>} : vector<8x32xbf16>, vector<32x32xbf16>, vector<8x32xf32> -> vector<8x32xf32>
      %c0_19 = arith.constant 0 : index
      %c0_20 = arith.constant 0 : index
      %21 = vector.load %arg7[%c0_19, %c0_20] : memref<32x32xbf16, #tpu.memory_space<vmem>>, vector<32x32xbf16>
      %cst_21 = arith.constant dense<0.000000e+00> : vector<8x32xf32>
      %22 = tpu.matmul %17, %21, %cst_21 {dimension_numbers = #tpu.dot_dimension_numbers<[1], [0], [0], [1], [0, 0, 1, 1], [], []>} : vector<8x32xbf16>, vector<32x32xbf16>, vector<8x32xf32> -> vector<8x32xf32>
      %23 = arith.addf %20, %22 : vector<8x32xf32>
      %c0_22 = arith.constant 0 : index
      %c0_23 = arith.constant 0 : index
      %24 = vector.load %arg8[%c0_22, %c0_23] : memref<1x32xf32, #tpu.memory_space<vmem>>, vector<1x32xf32>
      %25 = vector.broadcast %24 : vector<1x32xf32> to vector<8x32xf32>
      %26 = arith.addf %23, %25 : vector<8x32xf32>
      %cst_24 = arith.constant 0.000000e+00 : f32
      %27 = vector.broadcast %cst_24 : f32 to vector<8x32xf32>
      %28 = arith.maximumf %26, %27 : vector<8x32xf32>
      %29 = arith.truncf %28 : vector<8x32xf32> to vector<8x32xbf16>
      %c0_25 = arith.constant 0 : index
      %c0_26 = arith.constant 0 : index
      %30 = vector.load %arg9[%c0_25, %c0_26] : memref<8x32xbf16, #tpu.memory_space<vmem>>, vector<8x32xbf16>
      tpu.vector_store %arg9[%c0_25, %c0_26], %29 {strides = array<i32>} : memref<8x32xbf16, #tpu.memory_space<vmem>>, vector<8x32xbf16>,
    } else {
    }
    return
  }
  func.func @transform_0(%arg0: i32, %arg1: i32) -> (i32, i32) {
    %c0_i32 = arith.constant 0 : i32
    return %arg0, %arg1 : i32, i32
  }
  func.func @transform_1(%arg0: i32, %arg1: i32) -> (i32, i32) {
    %c0_i32 = arith.constant 0 : i32
    %c0_i32_0 = arith.constant 0 : i32
    return %arg0, %c0_i32 : i32, i32
  }
  func.func @transform_2(%arg0: i32, %arg1: i32) -> (i32, i32) {
    %c0_i32 = arith.constant 0 : i32
    %c0_i32_0 = arith.constant 0 : i32
    return %arg1, %c0_i32 : i32, i32
  }
  func.func @transform_3(%arg0: i32, %arg1: i32) -> (i32, i32) {
    %c0_i32 = arith.constant 0 : i32
    %c0_i32_0 = arith.constant 0 : i32
    return %arg0, %c0_i32 : i32, i32
  }
  func.func @transform_4(%arg0: i32, %arg1: i32) -> (i32, i32) {
    %c0_i32 = arith.constant 0 : i32
    %c0_i32_0 = arith.constant 0 : i32
    %c0_i32_1 = arith.constant 0 : i32
    return %c0_i32, %c0_i32_0 : i32, i32
  }
  func.func @transform_5(%arg0: i32, %arg1: i32) -> (i32, i32) {
    %c0_i32 = arith.constant 0 : i32
    %c0_i32_0 = arith.constant 0 : i32
    %c0_i32_1 = arith.constant 0 : i32
    return %c0_i32, %c0_i32_0 : i32, i32
  }
  func.func @transform_6(%arg0: i32, %arg1: i32) -> (i32, i32) {
    %c0_i32 = arith.constant 0 : i32
    %c0_i32_0 = arith.constant 0 : i32
    %c0_i32_1 = arith.constant 0 : i32
    return %c0_i32, %c0_i32_0 : i32, i32
  }
  func.func @transform_7(%arg0: i32, %arg1: i32) -> (i32, i32) {
    %c0_i32 = arith.constant 0 : i32
    %c0_i32_0 = arith.constant 0 : i32
    return %arg0, %c0_i32 : i32, i32
  }
}

</mosaic_0001>

<llo_original>
// kernel: tpu_custom_call.1
$region0: #{tpu_custom_call.1}
  #allocation0 [shape = 'u32[]', space=smem, size = 0x4, offset = 0x4, fixed_abs, tag = 'smem constant byte address 0x4 - core index']
  #allocation1 [shape = 'u32[72,128]{1,0:T(1,128)}', space=vmem, size = 0x9000, scoped, tag = 'internal scratch']
  #allocation2 [shape = 'f32[8,32]{1,0:T(8,128)}', space=vmem, size = 0x1000, scoped, tag = 'scratch operand']
  %s0 = inlined_call_operand.hbm [shape: s8[8,8], index: 0, kind: input, shape index: {}]
  %s1 = inlined_call_operand.vmem [shape: f32[8,1], index: 1, kind: input, shape index: {}]
  %s2 = inlined_call_operand.vmem [shape: bf16[8,32], index: 2, kind: input, shape index: {}]
  %s3 = inlined_call_operand.vmem [shape: bf16[8,32], index: 3, kind: input, shape index: {}]
  %s4 = inlined_call_operand.hbm [shape: bf16[32,32], index: 4, kind: input, shape index: {}]
  %s5 = inlined_call_operand.hbm [shape: bf16[32,32], index: 5, kind: input, shape index: {}]
  %s6 = inlined_call_operand.vmem [shape: f32[1,32], index: 6, kind: input, shape index: {}]
  %s7 = inlined_call_operand.hbm [shape: bf16[8,32], index: 7, kind: output, shape index: {}]
  %s8 = sld [smem:[#allocation0]]
  $region58: #{tpu_custom_call.1} parent=0
    _
  %s10 = ssub.s32 1, %s8
  %s11 = scalar_select 0, %s10, %s8
  $region1: #{tpu_custom_call.1} parent=0
    #allocation3 [shape = 'u8[1024]{0}', space=vmem, size = 0x400, scoped, tag = 'input window, operand 0, single buffered']
    #allocation4 [shape = 's32[1]{0}', space=sflag, size = 0x4, scoped, tag = 'scoped memory for tpu_custom_call.1']
    #allocation5 [shape = 's32[1]{0}', space=sflag, size = 0x4, scoped, tag = 'scoped memory for tpu_custom_call.1']
    #allocation6 [shape = 'u8[8192]{0}', space=vmem, size = 0x2000, scoped, tag = 'input window, operand 4, single buffered']
    #allocation7 [shape = 's32[1]{0}', space=sflag, size = 0x4, scoped, tag = 'scoped memory for tpu_custom_call.1']
    #allocation8 [shape = 'u8[8192]{0}', space=vmem, size = 0x2000, scoped, tag = 'input window, operand 5, single buffered']
    #allocation9 [shape = 'u8[2048]{0}', space=vmem, size = 0x800, scoped, tag = 'output window, operand 0, single buffered']
    %12 = vsyncpa [#allocation4], 0
    %13 = vsyncpa [#allocation7], 0
    %14 = vsyncpa [#allocation5], 0
    // Predicated region
    $region2: #{tpu_custom_call.1} parent=1 // pred_check
      _
    $region3: #{tpu_custom_call.1} parent=1 // pred_check_branch
      %16 = sbr.rel (0) target = $region5
    $region4: #{tpu_custom_call.1} parent=1 // pred_region
      %18 = vsyncadd [#allocation4], 0
      %s20 = sshll.u32 %s0, 4
      %s21 = int_to_ptr.hbm [resolvable:$true] %s20
      %s22 = sshll.u32 [#allocation3], 4
      %s23 = int_to_ptr.vmem [resolvable:$true] %s22
      %25 = dma.hbm_to_vmem [thread:$0]  %s21, 32, %s23, [#allocation4]
    $region5: #{tpu_custom_call.1} parent=1 // pred_fallthru
      _
    // Predicated region
    $region6: #{tpu_custom_call.1} parent=1 // pred_check
      _
    $region7: #{tpu_custom_call.1} parent=1 // pred_check_branch
      %27 = sbr.rel (0) target = $region9
    $region8: #{tpu_custom_call.1} parent=1 // pred_region
      _
    $region9: #{tpu_custom_call.1} parent=1 // pred_fallthru
      _
    // Predicated region
    $region10: #{tpu_custom_call.1} parent=1 // pred_check
      _
    $region11: #{tpu_custom_call.1} parent=1 // pred_check_branch
      %29 = sbr.rel (0) target = $region13
    $region12: #{tpu_custom_call.1} parent=1 // pred_region
      _
    $region13: #{tpu_custom_call.1} parent=1 // pred_fallthru
      _
    // Predicated region
    $region14: #{tpu_custom_call.1} parent=1 // pred_check
      _
    $region15: #{tpu_custom_call.1} parent=1 // pred_check_branch
      %31 = sbr.rel (0) target = $region17
    $region16: #{tpu_custom_call.1} parent=1 // pred_region
      _
    $region17: #{tpu_custom_call.1} parent=1 // pred_fallthru
      _
    // Predicated region
    $region18: #{tpu_custom_call.1} parent=1 // pred_check
      _
    $region19: #{tpu_custom_call.1} parent=1 // pred_check_branch
      %33 = sbr.rel (0) target = $region21
    $region20: #{tpu_custom_call.1} parent=1 // pred_region
      %35 = vsyncadd [#allocation7], 0
      %s36 = sshll.u32 %s4, 4
      %s37 = int_to_ptr.hbm [resolvable:$true] %s36
      %s38 = sshll.u32 [#allocation6], 4
      %s39 = int_to_ptr.vmem [resolvable:$true] %s38
      %44 = dma.hbm_to_vmem [thread:$0]  %s37, 256, %s39, [#allocation7], 64, 64, 4
    $region21: #{tpu_custom_call.1} parent=1 // pred_fallthru
      _
    // Predicated region
    $region22: #{tpu_custom_call.1} parent=1 // pred_check
      _
    $region23: #{tpu_custom_call.1} parent=1 // pred_check_branch
      %46 = sbr.rel (0) target = $region25
    $region24: #{tpu_custom_call.1} parent=1 // pred_region
      %48 = vsyncadd [#allocation7], 0
      %s49 = sshll.u32 %s5, 4
      %s50 = int_to_ptr.hbm [resolvable:$true] %s49
      %s51 = sshll.u32 [#allocation8], 4
      %s52 = int_to_ptr.vmem [resolvable:$true] %s51
      %57 = dma.hbm_to_vmem [thread:$0]  %s50, 256, %s52, [#allocation7], 64, 64, 4
    $region25: #{tpu_custom_call.1} parent=1 // pred_fallthru
      _
    // Predicated region
    $region26: #{tpu_custom_call.1} parent=1 // pred_check
      _
    $region27: #{tpu_custom_call.1} parent=1 // pred_check_branch
      %59 = sbr.rel (0) target = $region29
    $region28: #{tpu_custom_call.1} parent=1 // pred_region
      _
    $region29: #{tpu_custom_call.1} parent=1 // pred_fallthru
      _
    // Predicated region
    $region30: #{tpu_custom_call.1} parent=1 // pred_check
      _
    $region31: #{tpu_custom_call.1} parent=1 // pred_check_branch
      %61 = sbr.rel (0) target = $region33
    $region32: #{tpu_custom_call.1} parent=1 // pred_region
      %63 = dma.done [#allocation4], 32
    $region33: #{tpu_custom_call.1} parent=1 // pred_fallthru
      _
    // Predicated region
    $region34: #{tpu_custom_call.1} parent=1 // pred_check
      _
    $region35: #{tpu_custom_call.1} parent=1 // pred_check_branch
      %65 = sbr.rel (0) target = $region37
    $region36: #{tpu_custom_call.1} parent=1 // pred_region
      %67 = dma.done [#allocation7], 256
    $region37: #{tpu_custom_call.1} parent=1 // pred_fallthru
      _
    // Predicated region
    $region38: #{tpu_custom_call.1} parent=1 // pred_check
      _
    $region39: #{tpu_custom_call.1} parent=1 // pred_check_branch
      %69 = sbr.rel (0) target = $region41
    $region40: #{tpu_custom_call.1} parent=1 // pred_region
      %71 = dma.done [#allocation7], 256
    $region41: #{tpu_custom_call.1} parent=1 // pred_fallthru
      _
    %p73 = scmp.eq.s32.totalorder 0, 0
    // Predicated region
    $region42: #{tpu_custom_call.1} parent=1 // pred_check
      %p74 = pneg %p73
    $region43: #{tpu_custom_call.1} parent=1 // pred_check_branch
      %76 = sbr.rel (%p74) target = $region45
    $region44: #{tpu_custom_call.1} parent=1 // pred_region
      %vm77 = vcmask 261120
      %78 = vst.msk [vmem:[#allocation2] sm:$0xff] %vm77, 0.0
    $region45: #{tpu_custom_call.1} parent=1 // pred_fallthru
      _
    %v79 = vld [vmem:[#allocation2] sm:$0xff]
    %v80 = vld [vmem:[#allocation3] sm:$0x3]
    %v81 = vunpack.c.0.s8 %v80
    %v82 = vcvt.s32.f32 %v81
    %v83 = vpack.c.bf16 %v82, %v82
    %v84 = vld [vmem:[%s2] sm:$0xf]
    %vm85 = vcmask 64512
    %v87 = vsel %vm85, %v83, 0
    %vm89 = vcmask 1043456
    %v91 = vsel %vm89, %v84, 0
    %93 = vmatpush.bf16.msra.mxu0 0
    %94 = vmatpush.bf16.msra.mxu0 0
    %95 = vmatpush.bf16.msra.mxu0 0
    %96 = vmatpush.bf16.msra.mxu0 0
    %97 = vmatpush.bf16.msra.mxu0 0
    %98 = vmatpush.bf16.msra.mxu0 0
    %99 = vmatpush.bf16.msra.mxu0 0
    %100 = vmatpush.bf16.msra.mxu0 %v91
    %101 = vmatmul.bf16.gmra.mxu0 %v87
    %v102 = vpop.f32.mrf.mxu0
    %v103 = vadd.f32 0.0, %v102
    %v104 = vpop.f32.mrf.mxu0
    %105 = vdwg.mxu0
    %v106 = vadd.f32 %v79, %v103
    %vm107 = vcmask 261120
    %108 = vst.msk [vmem:[#allocation2] sm:$0xff] %vm107, %v106
    // Predicated region
    $region46: #{tpu_custom_call.1} parent=1 // pred_check
      %p109 = pneg %p73
    $region47: #{tpu_custom_call.1} parent=1 // pred_check_branch
      %111 = sbr.rel (%p109) target = $region49
    $region48: #{tpu_custom_call.1} parent=1 // pred_region
      %v112 = vld [vmem:[#allocation2] sm:$0xff]
      %v113 = vld [vmem:[%s1] sm:$0xff]
      %115 = vset.pattern.permute.xlu0 0
      %116 = vperm.xlu0 %115, %v113
      %v117 = vpop.permute.xlu0 %116
      %v119 = vmul.f32 %v112, %v117
      %v120 = vpack.c.bf16 %v119, %v119
      %v121 = vld [vmem:[%s3] sm:$0xf]
      %v122 = vld [vmem:[#allocation6] sm:$0xf]
      %v123 = vld [vmem:[#allocation6 + $0x4] sm:$0xf]
      %v124 = vld [vmem:[#allocation6 + $0x8] sm:$0xf]
      %v125 = vld [vmem:[#allocation6 + $0xc] sm:$0xf]
      %v126 = vld [vmem:[#allocation8] sm:$0xf]
      %v127 = vld [vmem:[#allocation8 + $0x4] sm:$0xf]
      %v128 = vld [vmem:[#allocation8 + $0x8] sm:$0xf]
      %v129 = vld [vmem:[#allocation8 + $0xc] sm:$0xf]
      %v134 = vunpack.c.l.b16 %v126
      %v135 = vunpack.c.l.b16 %v127
      %v136 = vunpack.c.l.b16 %v128
      %v137 = vunpack.c.l.b16 %v129
      %v138 = vpack.c.b16 %v135, %v134
      %v139 = vpack.c.b16 %v137, %v136
      %v143 = vsel %vm107, %v120, 0
      %145 = vmatpush.bf16.msra.mxu0 0
      %146 = vmatpush.bf16.msra.mxu0 0
      %147 = vmatpush.bf16.msra.mxu0 0
      %148 = vmatpush.bf16.msra.mxu0 0
      %149 = vmatpush.bf16.msra.mxu0 0
      %150 = vmatpush.bf16.msra.mxu0 0
      %151 = vmatpush.bf16.msra.mxu0 %v139
      %152 = vmatpush.bf16.msra.mxu0 %v138
      %153 = vmatmul.bf16.gmra.mxu0 %v143
      %v154 = vpop.f32.mrf.mxu0
      %v155 = vadd.f32 0.0, %v154
      %v156 = vpop.f32.mrf.mxu0
      %157 = vdwg.mxu0
      %v162 = vunpack.c.l.b16 %v122
      %v163 = vunpack.c.l.b16 %v123
      %v164 = vunpack.c.l.b16 %v124
      %v165 = vunpack.c.l.b16 %v125
      %v166 = vpack.c.b16 %v163, %v162
      %v167 = vpack.c.b16 %v165, %v164
      %v171 = vsel %vm107, %v121, 0
      %173 = vmatpush.bf16.msra.mxu0 0
      %174 = vmatpush.bf16.msra.mxu0 0
      %175 = vmatpush.bf16.msra.mxu0 0
      %176 = vmatpush.bf16.msra.mxu0 0
      %177 = vmatpush.bf16.msra.mxu0 0
      %178 = vmatpush.bf16.msra.mxu0 0
      %179 = vmatpush.bf16.msra.mxu0 %v167
      %180 = vmatpush.bf16.msra.mxu0 %v166
      %181 = vmatmul.bf16.gmra.mxu0 %v171
      %v182 = vpop.f32.mrf.mxu0
      %v183 = vadd.f32 %v155, %v182
      %v184 = vpop.f32.mrf.mxu0
      %185 = vdwg.mxu0
      %v186 = vld [vmem:[%s6] sm:$0x1]
      %v188 = vperm.slane %v186, 0
      %v190 = vadd.f32 %v183, %v188
      %v191 = vmax.f32 %v190, 0.0
      %v192 = vpack.c.bf16 %v191, %v191
      %vm193 = vcmask 257024
      %194 = vst.msk [vmem:[#allocation9] sm:$0xf] %vm193, %v192
    $region49: #{tpu_custom_call.1} parent=1 // pred_fallthru
      _
    // Predicated region
    $region50: #{tpu_custom_call.1} parent=1 // pred_check
      _
    $region51: #{tpu_custom_call.1} parent=1 // pred_check_branch
      %196 = sbr.rel (0) target = $region53
    $region52: #{tpu_custom_call.1} parent=1 // pred_region
      %198 = vsyncadd [#allocation5], 0
      %s200 = sshll.u32 [#allocation9], 4
      %s201 = int_to_ptr.vmem [resolvable:$true] %s200
      %s202 = sshll.u32 %s7, 4
      %s203 = int_to_ptr.hbm [resolvable:$true] %s202
      %205 = dma.vmem_to_hbm [thread:$0]  %s201, 64, %s203, [#allocation5]
    $region53: #{tpu_custom_call.1} parent=1 // pred_fallthru
      _
    // Predicated region
    $region54: #{tpu_custom_call.1} parent=1 // pred_check
      _
    $region55: #{tpu_custom_call.1} parent=1 // pred_check_branch
      %207 = sbr.rel (0) target = $region57
    $region56: #{tpu_custom_call.1} parent=1 // pred_region
      %209 = dma.done [#allocation5], 64
    $region57: #{tpu_custom_call.1} parent=1 // pred_fallthru
      _
    %210 = vsyncpa [#allocation4], 1
    %211 = vsyncpa [#allocation7], 1
    %212 = vsyncpa [#allocation5], 1

</llo_original>
